<compile_context>
chip_gen: v5e
topology: v5e:2x2
jax: 0.10.0
libtpu: 0.0.40
codegen_flags: <defaults>
</compile_context>

<pallas_src>
import functools
import math

import jax
import jax.numpy as jnp
from jax.experimental import pallas as pl
from jax.experimental.pallas import tpu as pltpu


# ----------------------------------------------------------------------------
# Pallas kernel: negatives against one tile of the (pre-transposed) queue.
# ----------------------------------------------------------------------------
def _neg_kernel(q_ref, mem_ref, neg_ref):
    # q_ref:   [Bp, D]  (already scaled by 1/temperature, stored in queue dtype)
    # mem_ref: [D, tk]  queue tile, pre-transposed -> no .T inside the kernel
    # neg_ref: [Bp, tk] f32 output tile (lane-dense, unmasked stores)
    neg_ref[...] = jnp.dot(q_ref[...], mem_ref[...],
                           preferred_element_type=jnp.float32)


def _pick_queue_tile(K, D, Bp, mem_itemsize, budget_bytes=20 * 1024 * 1024):
    """Largest queue tile (multiple of 128, preferring >=256) that divides K and
    fits a conservative double-buffered VMEM budget (sized for v7x's 64 MiB)."""
    def fits(tk):
        # 2x queue tile (double buffer) + 2x f32 output tile.
        return 2 * tk * D * mem_itemsize + 2 * Bp * tk * 4 <= budget_bytes

    for tk in (4096, 2048, 1024, 512, 256, 128):
        if K % tk == 0 and fits(tk):
            return tk
    # Irregular / tiny queue: single tile covering the full dimension is legal.
    return K


def _mcl_negatives(q_scaled, memory_t):
    """q_scaled: [B, D] f32 (already divided by temperature).
    memory_t:   [D, K] queue (bf16 by default).
    Returns negatives / temperature as f32 [B, K]."""
    D, K = memory_t.shape
    B = q_scaled.shape[0]
    # Pad batch to a sublane multiple (>=8) so the MXU M dim / vreg sublanes and
    # the output tile rows are fully used.
    Bp = max(8, ((B + 7) // 8) * 8)
    qb = q_scaled.astype(memory_t.dtype)
    if Bp != B:
        qb = jnp.pad(qb, ((0, Bp - B), (0, 0)))

    tk = _pick_queue_tile(K, D, Bp, jnp.dtype(memory_t.dtype).itemsize)
    grid = (K // tk,)

    neg = pl.pallas_call(
        _neg_kernel,
        out_shape=jax.ShapeDtypeStruct((Bp, K), jnp.float32),
        grid_spec=pltpu.PrefetchScalarGridSpec(
            num_scalar_prefetch=0,
            grid=grid,
            in_specs=[pl.BlockSpec((Bp, D), lambda j: (0, 0)),   # q (resident)
                      pl.BlockSpec((D, tk), lambda j: (0, j))],  # queue tile
            out_specs=pl.BlockSpec((Bp, tk), lambda j: (0, j)),  # neg tile
        ),
        compiler_params=pltpu.CompilerParams(
            # No resident/accumulated output across the queue axis -> safe to
            # mark parallel (shards the K loop across v7x's two TensorCores).
            dimension_semantics=("parallel",),
            vmem_limit_bytes=48 * 1024 * 1024,
        ),
    )(qb, memory_t)
    return neg[:B]


# ----------------------------------------------------------------------------
# Module
# ----------------------------------------------------------------------------
class MemoryMCL:
    """Fixed-size queue with momentum encoder (JAX / Pallas port).

    The queue is stored as memory_t[D, K] in bfloat16: halves the dominant HBM
    stream and feeds the MXU natively (f32 accumulation in-kernel).
    """

    def __init__(self, feature_dim, queue_size, temperature=0.07,
                 temperature_intra=1.0, multi_clip=True, seed=0,
                 memory_dtype=jnp.bfloat16):
        self.queue_size = queue_size
        self.temperature = temperature
        self.temperature_intra = temperature_intra
        self.index = 0
        self.multi_clip = multi_clip
        self._inv_temp = 1.0 / temperature
        stdv = 1.0 / math.sqrt(feature_dim / 3)
        # torch.rand(...).mul_(2*stdv).add_(-stdv) == Uniform(-stdv, stdv),
        # stored transposed [D, K] and in bf16.
        self.memory_t = jax.random.uniform(
            jax.random.PRNGKey(seed), (feature_dim, queue_size),
            dtype=jnp.float32, minval=-stdv, maxval=stdv).astype(memory_dtype)

    @property
    def memory(self):
        """[queue_size, feature_dim] f32 view of the queue (torch layout)."""
        return self.memory_t.T.astype(jnp.float32)

    def __call__(self, q, k_sf, k_df1=None, k_df2=None, k_all_sf=None,
                 k_all_df1=None, k_all_df2=None, inter=True):
        q = q.astype(jnp.float32)
        kd1 = k_df1 if k_df1 is not None else k_sf
        kd2 = k_df2 if k_df2 is not None else k_sf

        # Positive logits: O(B*D) -> plain JAX (hoisted out of the kernel).
        l_pos_sf = jnp.sum(q * k_sf, axis=-1, keepdims=True)

        if inter:
            # Negatives (already / temperature) via the Pallas kernel.
            neg_scaled = _mcl_negatives(q * self._inv_temp, self.memory_t)
            B, K = neg_scaled.shape

            if self.multi_clip:
                l_pos_df1 = jnp.sum(q * kd1, axis=-1, keepdims=True)
                l_pos_df2 = jnp.sum(q * kd2, axis=-1, keepdims=True)
                pos_col = jnp.concatenate(
                    [l_pos_sf, l_pos_df1, l_pos_df2], axis=0) * self._inv_temp
                # Lazy row-triplication of the negatives: broadcast+reshape is
                # fused by XLA into the concat (no materialized 3x copy).
                # TODO(synk): the +1 column offset of the [3B, 1+K] layout cannot
                # be expressed as an aligned Pallas out BlockSpec, so the final
                # assembly stays as a single fused XLA broadcast+concat.
                neg3 = jnp.broadcast_to(
                    neg_scaled[None], (3, B, K)).reshape(3 * B, K)
                out = jnp.concatenate([pos_col, neg3], axis=1)
            else:
                out = jnp.concatenate(
                    [l_pos_sf * self._inv_temp, neg_scaled], axis=1)

            # Circular queue update (module buffer state, kept as JAX glue).
            # TODO(synk): scatter into module state has no Pallas equivalent.
            k_all = (jnp.concatenate([k_all_sf, k_all_df1, k_all_df2], axis=0)
                     if self.multi_clip else k_all_sf)
            all_size = k_all.shape[0]
            ids = jnp.mod(jnp.arange(all_size) + self.index, self.queue_size)
            self.memory_t = self.memory_t.at[:, ids].set(
                k_all.T.astype(self.memory_t.dtype))
            self.index = (self.index + all_size) % self.queue_size
            return out, l_pos_sf
        else:
            l_pos_df1 = jnp.sum(q * kd1, axis=-1, keepdims=True)
            l_pos_df2 = jnp.sum(q * kd2, axis=-1, keepdims=True)
            out = jnp.concatenate(
                [jnp.tile(l_pos_sf, (2, 1)),
                 jnp.concatenate([l_pos_df1, l_pos_df2], axis=0)],
                axis=-1) / self.temperature_intra
            return out


# ----------------------------------------------------------------------------
# Self-test
# ----------------------------------------------------------------------------
if __name__ == "__main__":
    feature_dim = 32
    queue_size = 256
    batch = 4

    key = jax.random.PRNGKey(0)
    keys = jax.random.split(key, 7)
    q = jax.random.normal(keys[0], (batch, feature_dim), jnp.float32)
    k_sf = jax.random.normal(keys[1], (batch, feature_dim), jnp.float32)
    k_df1 = jax.random.normal(keys[2], (batch, feature_dim), jnp.float32)
    k_df2 = jax.random.normal(keys[3], (batch, feature_dim), jnp.float32)
    k_all_sf = jax.random.normal(keys[4], (batch, feature_dim), jnp.float32)
    k_all_df1 = jax.random.normal(keys[5], (batch, feature_dim), jnp.float32)
    k_all_df2 = jax.random.normal(keys[6], (batch, feature_dim), jnp.float32)

    module = MemoryMCL(feature_dim, queue_size, temperature=0.07,
                       temperature_intra=1.0, multi_clip=True)
    mem_t_before = module.memory_t  # [D, K] bf16

    out, l_pos_sf = module(q, k_sf, k_df1, k_df2,
                           k_all_sf, k_all_df1, k_all_df2, inter=True)
    jax.block_until_ready((out, l_pos_sf, module.memory_t))

    # Precision-matched pure-JAX reference (bf16-cast operands, f32 accumulate),
    # mirroring the torch forward of the inter=True / multi_clip=True path.
    inv_t = 1.0 / module.temperature
    q_b = (q * inv_t).astype(mem_t_before.dtype).astype(jnp.float32)
    mem_f = mem_t_before.astype(jnp.float32)                     # [D, K]
    neg_ref = jnp.dot(q_b, mem_f, precision=jax.lax.Precision.HIGHEST)
    l_pos_sf_r = jnp.sum(q * k_sf, axis=-1, keepdims=True)
    l_pos_df1_r = jnp.sum(q * k_df1, axis=-1, keepdims=True)
    l_pos_df2_r = jnp.sum(q * k_df2, axis=-1, keepdims=True)
    pos_col_r = jnp.concatenate(
        [l_pos_sf_r, l_pos_df1_r, l_pos_df2_r], axis=0) * inv_t
    out_ref = jnp.concatenate([pos_col_r, jnp.tile(neg_ref, (3, 1))], axis=1)

    assert out.shape == (3 * batch, 1 + queue_size)
    assert l_pos_sf.shape == (batch, 1)
    assert jnp.allclose(out, out_ref, atol=2e-3, rtol=2e-3)
    assert jnp.allclose(l_pos_sf, l_pos_sf_r, atol=1e-5, rtol=1e-5)

    # Queue update check: first 3*batch columns of memory_t were overwritten
    # (index started at 0) with the enqueued keys.
    k_all = jnp.concatenate([k_all_sf, k_all_df1, k_all_df2], axis=0)
    assert jnp.allclose(
        module.memory_t[:, :3 * batch].astype(jnp.float32),
        k_all.T.astype(module.memory_t.dtype).astype(jnp.float32))
    assert module.index == (3 * batch) % queue_size

    # Also exercise the intra (inter=False) branch.
    out_intra = module(q, k_sf, k_df1, k_df2, inter=False)
    jax.block_until_ready(out_intra)
    assert out_intra.shape == (2 * batch, 2)

    print("KERNEL_OK")
</pallas_src>

<mosaic_0001>
module attributes {stable_mosaic.version = 11 : i64} {
  func.func @_neg_kernel(%arg0: i32, %arg1: memref<8x32xbf16, #tpu.memory_space<vmem>>, %arg2: memref<32x256xbf16, #tpu.memory_space<vmem>>, %arg3: memref<8x256xf32, #tpu.memory_space<vmem>>) attributes {dimension_semantics = [#tpu.dimension_semantics<parallel>], iteration_bounds = array<i64: 1>, scalar_prefetch = 0 : i64, scratch_operands = 0 : i64, tpu.core_type = #tpu.core_type<tc>, window_params = [{pipeline_mode = #tpu.pipeline_mode<synchronous>, transform_indices = @transform_0, window_bounds = array<i64: 8, 32>}, {transform_indices = @transform_1, window_bounds = array<i64: 32, 256>}, {transform_indices = @transform_2, window_bounds = array<i64: 8, 256>}]} {
    %c0 = arith.constant 0 : index
    %c0_0 = arith.constant 0 : index
    %0 = vector.load %arg1[%c0, %c0_0] : memref<8x32xbf16, #tpu.memory_space<vmem>>, vector<8x32xbf16>
    %c0_1 = arith.constant 0 : index
    %c0_2 = arith.constant 0 : index
    %1 = vector.load %arg2[%c0_1, %c0_2] : memref<32x256xbf16, #tpu.memory_space<vmem>>, vector<32x256xbf16>
    %cst = arith.constant dense<0.000000e+00> : vector<8x256xf32>
    %2 = tpu.matmul %0, %1, %cst {dimension_numbers = #tpu.dot_dimension_numbers<[1], [0], [0], [1], [0, 0, 1, 1], [], []>} : vector<8x32xbf16>, vector<32x256xbf16>, vector<8x256xf32> -> vector<8x256xf32>
    %c0_3 = arith.constant 0 : index
    %c0_4 = arith.constant 0 : index
    %3 = vector.load %arg3[%c0_3, %c0_4] : memref<8x256xf32, #tpu.memory_space<vmem>>, vector<8x256xf32>
    tpu.vector_store %arg3[%c0_3, %c0_4], %2 {strides = array<i32>} : memref<8x256xf32, #tpu.memory_space<vmem>>, vector<8x256xf32>,
    return
  }
  func.func @transform_0(%arg0: i32) -> (i32, i32) {
    %c0_i32 = arith.constant 0 : i32
    %c0_i32_0 = arith.constant 0 : i32
    %c0_i32_1 = arith.constant 0 : i32
    return %c0_i32, %c0_i32_0 : i32, i32
  }
  func.func @transform_1(%arg0: i32) -> (i32, i32) {
    %c0_i32 = arith.constant 0 : i32
    %c0_i32_0 = arith.constant 0 : i32
    return %c0_i32, %arg0 : i32, i32
  }
  func.func @transform_2(%arg0: i32) -> (i32, i32) {
    %c0_i32 = arith.constant 0 : i32
    %c0_i32_0 = arith.constant 0 : i32
    return %c0_i32, %arg0 : i32, i32
  }
}

</mosaic_0001>

<llo_original>
// kernel: tpu_custom_call.1
$region0: #{tpu_custom_call.1}
  #allocation0 [shape = 'u32[]', space=smem, size = 0x4, offset = 0x4, fixed_abs, tag = 'smem constant byte address 0x4 - core index']
  #allocation1 [shape = 'u32[72,128]{1,0:T(1,128)}', space=vmem, size = 0x9000, scoped, tag = 'internal scratch']
  %s0 = inlined_call_operand.hbm [shape: bf16[8,32], index: 0, kind: input, shape index: {}]
  %s1 = inlined_call_operand.hbm [shape: bf16[32,256], index: 1, kind: input, shape index: {}]
  %s2 = inlined_call_operand.hbm [shape: f32[8,256], index: 2, kind: output, shape index: {}]
  %s3 = sld [smem:[#allocation0]]
  $region26: #{tpu_custom_call.1} parent=0
    _
  %s5 = ssub.s32 1, %s3
  %s6 = scalar_select 0, %s5, %s3
  $region1: #{tpu_custom_call.1} parent=0
    #allocation2 [shape = 'u8[2048]{0}', space=vmem, size = 0x800, scoped, tag = 'input window, operand 0, single buffered']
    #allocation3 [shape = 's32[1]{0}', space=sflag, size = 0x4, scoped, tag = 'scoped memory for tpu_custom_call.1']
    #allocation4 [shape = 's32[1]{0}', space=sflag, size = 0x4, scoped, tag = 'scoped memory for tpu_custom_call.1']
    #allocation5 [shape = 'u8[16384]{0}', space=vmem, size = 0x4000, scoped, tag = 'input window, operand 1, single buffered']
    #allocation6 [shape = 's32[1]{0}', space=sflag, size = 0x4, scoped, tag = 'scoped memory for tpu_custom_call.1']
    #allocation7 [shape = 'u8[8192]{0}', space=vmem, size = 0x2000, scoped, tag = 'output window, operand 0, single buffered']
    %7 = vsyncpa [#allocation3], 0
    %8 = vsyncpa [#allocation6], 0
    %9 = vsyncpa [#allocation4], 0
    // Predicated region
    $region2: #{tpu_custom_call.1} parent=1 // pred_check
      _
    $region3: #{tpu_custom_call.1} parent=1 // pred_check_branch
      %11 = sbr.rel (0) target = $region5
    $region4: #{tpu_custom_call.1} parent=1 // pred_region
      %13 = vsyncadd [#allocation3], 0
      %s15 = sshll.u32 %s0, 4
      %s16 = int_to_ptr.hbm [resolvable:$true] %s15
      %s17 = sshll.u32 [#allocation2], 4
      %s18 = int_to_ptr.vmem [resolvable:$true] %s17
      %20 = dma.hbm_to_vmem [thread:$0]  %s16, 64, %s18, [#allocation3]
    $region5: #{tpu_custom_call.1} parent=1 // pred_fallthru
      _
    // Predicated region
    $region6: #{tpu_custom_call.1} parent=1 // pred_check
      _
    $region7: #{tpu_custom_call.1} parent=1 // pred_check_branch
      %22 = sbr.rel (0) target = $region9
    $region8: #{tpu_custom_call.1} parent=1 // pred_region
      %24 = vsyncadd [#allocation6], 0
      %s25 = sshll.u32 %s1, 4
      %s26 = int_to_ptr.hbm [resolvable:$true] %s25
      %s27 = sshll.u32 [#allocation5], 4
      %s28 = int_to_ptr.vmem [resolvable:$true] %s27
      %33 = dma.hbm_to_vmem [thread:$0]  %s26, 512, %s28, [#allocation6], 128, 128, 8
    $region9: #{tpu_custom_call.1} parent=1 // pred_fallthru
      _
    // Predicated region
    $region10: #{tpu_custom_call.1} parent=1 // pred_check
      _
    $region11: #{tpu_custom_call.1} parent=1 // pred_check_branch
      %35 = sbr.rel (0) target = $region13
    $region12: #{tpu_custom_call.1} parent=1 // pred_region
      %37 = dma.done [#allocation3], 64
    $region13: #{tpu_custom_call.1} parent=1 // pred_fallthru
      _
    // Predicated region
    $region14: #{tpu_custom_call.1} parent=1 // pred_check
      _
    $region15: #{tpu_custom_call.1} parent=1 // pred_check_branch
      %39 = sbr.rel (0) target = $region17
    $region16: #{tpu_custom_call.1} parent=1 // pred_region
      %41 = dma.done [#allocation6], 512
    $region17: #{tpu_custom_call.1} parent=1 // pred_fallthru
      _
    %v43 = vld [vmem:[#allocation2] sm:$0xf]
    %v44 = vld [vmem:[#allocation5] sm:$0xff]
    %v45 = vld [vmem:[#allocation5 + $0x8] sm:$0xff]
    %v46 = vld [vmem:[#allocation5 + $0x10] sm:$0xff]
    %v47 = vld [vmem:[#allocation5 + $0x18] sm:$0xff]
    %v52 = vunpack.c.l.b16 %v44
    %v53 = vunpack.c.h.b16 %v44
    %v54 = vunpack.c.l.b16 %v45
    %v55 = vunpack.c.h.b16 %v45
    %v56 = vunpack.c.l.b16 %v46
    %v57 = vunpack.c.h.b16 %v46
    %v58 = vunpack.c.l.b16 %v47
    %v59 = vunpack.c.h.b16 %v47
    %v60 = vpack.c.b16 %v54, %v52
    %v61 = vpack.c.b16 %v55, %v53
    %v62 = vpack.c.b16 %v58, %v56
    %v63 = vpack.c.b16 %v59, %v57
    %vm68 = vcmask 261120
    %v70 = vsel %vm68, %v43, 0
    %72 = vmatpush.bf16.msra.mxu0 0
    %73 = vmatpush.bf16.msra.mxu0 0
    %74 = vmatpush.bf16.msra.mxu0 0
    %75 = vmatpush.bf16.msra.mxu0 0
    %76 = vmatpush.bf16.msra.mxu0 0
    %77 = vmatpush.bf16.msra.mxu0 0
    %78 = vmatpush.bf16.msra.mxu0 %v62
    %79 = vmatpush.bf16.msra.mxu0 %v60
    %80 = vmatmul.bf16.gmra.mxu0 %v70
    %v81 = vpop.f32.mrf.mxu0
    %v82 = vadd.f32 0.0, %v81
    %v83 = vpop.f32.mrf.mxu0
    %84 = vdwg.mxu0
    %85 = vmatpush.bf16.msra.mxu0 0
    %86 = vmatpush.bf16.msra.mxu0 0
    %87 = vmatpush.bf16.msra.mxu0 0
    %88 = vmatpush.bf16.msra.mxu0 0
    %89 = vmatpush.bf16.msra.mxu0 0
    %90 = vmatpush.bf16.msra.mxu0 0
    %91 = vmatpush.bf16.msra.mxu0 %v63
    %92 = vmatpush.bf16.msra.mxu0 %v61
    %93 = vmatmul.bf16.gmra.mxu0 %v70
    %v94 = vpop.f32.mrf.mxu0
    %v95 = vadd.f32 0.0, %v94
    %v96 = vpop.f32.mrf.mxu0
    %97 = vdwg.mxu0
    %98 = vst [vmem:[#allocation7] sm:$0xff] %v82
    %99 = vst [vmem:[#allocation7 + $0x8] sm:$0xff] %v95
    // Predicated region
    $region18: #{tpu_custom_call.1} parent=1 // pred_check
      _
    $region19: #{tpu_custom_call.1} parent=1 // pred_check_branch
      %101 = sbr.rel (0) target = $region21
    $region20: #{tpu_custom_call.1} parent=1 // pred_region
      %103 = vsyncadd [#allocation4], 0
      %s105 = sshll.u32 [#allocation7], 4
      %s106 = int_to_ptr.vmem [resolvable:$true] %s105
      %s107 = sshll.u32 %s2, 4
      %s108 = int_to_ptr.hbm [resolvable:$true] %s107
      %110 = dma.vmem_to_hbm [thread:$0]  %s106, 256, %s108, [#allocation4]
    $region21: #{tpu_custom_call.1} parent=1 // pred_fallthru
      _
    // Predicated region
    $region22: #{tpu_custom_call.1} parent=1 // pred_check
      _
    $region23: #{tpu_custom_call.1} parent=1 // pred_check_branch
      %112 = sbr.rel (0) target = $region25
    $region24: #{tpu_custom_call.1} parent=1 // pred_region
      %114 = dma.done [#allocation4], 256
    $region25: #{tpu_custom_call.1} parent=1 // pred_fallthru
      _
    %115 = vsyncpa [#allocation3], 1
    %116 = vsyncpa [#allocation6], 1
    %117 = vsyncpa [#allocation4], 1

</llo_original>
